<compile_context>
chip_gen: v6e
topology: v6e:2x2x1
jax: 0.10.0
libtpu: 0.0.40
codegen_flags: <defaults>
</compile_context>

<pallas_src>
import functools

import jax
import jax.numpy as jnp
from jax.experimental import pallas as pl
from jax.experimental.pallas import tpu as pltpu

LANES = 128
SUBLANES = 8
BLOCK_ROWS_CAP = 1024   # 1024 x 128 f32 = 512 KiB / input / step; ~4 MiB total
NCORES = 2              # leading "parallel" grid axis (megacore on v7x)


def _round_up(x, m):
    return ((x + m - 1) // m) * m


def _pack(x, pad_value):
    """Flatten to a lane-dense (rows, 128) f32 slab.

    rows is a multiple of the chosen block row count.  Returns
    (array_2d, n_valid_elements, n_blocks, block_rows).  When the flat size is
    already aligned the reshape is copy-free (no jnp.pad pass over HBM).
    """
    x_flat = jnp.ravel(x).astype(jnp.float32)
    n = x_flat.shape[0]
    rows = pl.cdiv(n, LANES)
    block_rows = min(BLOCK_ROWS_CAP, _round_up(max(rows, 1), SUBLANES))
    rows_padded = _round_up(max(rows, 1), block_rows)
    n_padded = rows_padded * LANES
    if n_padded != n:
        # TODO(synk): a masked last grid step (scalar-prefetch n + iota) would
        # avoid this pad copy for large unaligned inputs; pad values are chosen
        # so padded elements contribute exactly zero to the sums.
        x_flat = jnp.pad(x_flat, (0, n_padded - n), constant_values=pad_value)
    return x_flat.reshape(rows_padded, LANES), n, rows_padded // block_rows, block_rows


def _fused_loss(x2d, y2d, p2d, t2d, n_mse, n_bce,
                nblk_m, bm, nblk_b, bb, l1scaling):
    steps_m = pl.cdiv(nblk_m, NCORES)
    steps_b = pl.cdiv(nblk_b, NCORES)
    steps = max(steps_m, steps_b)

    inv_n_mse = 1.0 / float(n_mse)
    inv_n_bce = 1.0 / float(n_bce)
    l1 = float(l1scaling)

    # Clamped index maps: out-of-range steps re-select the previous block
    # (no re-DMA when the block index is unchanged); the kernel guards skip
    # their contribution so nothing is double counted.
    def mse_map(c, i):
        return (jnp.minimum(c * steps_m + i, nblk_m - 1), 0)

    def bce_map(c, i):
        return (jnp.minimum(c * steps_b + i, nblk_b - 1), 0)

    def kernel(x_ref, y_ref, p_ref, t_ref, o_ref, acc_m, acc_b):
        c = pl.program_id(0)
        i = pl.program_id(1)

        @pl.when(i == 0)
        def _():
            acc_m[...] = jnp.zeros_like(acc_m)
            acc_b[...] = jnp.zeros_like(acc_b)

        # --- MSE partial: sum of squared differences (pure VPU accumulate) ---
        @pl.when(jnp.logical_and(i < steps_m, c * steps_m + i < nblk_m))
        def _():
            d = x_ref[...] - y_ref[...]
            acc_m[...] += jnp.sum((d * d).reshape(-1, SUBLANES, LANES), axis=0)

        # --- BCE partial: -(t*log p + (1-t)*log(1-p)), logs clamped at -100 ---
        @pl.when(jnp.logical_and(i < steps_b, c * steps_b + i < nblk_b))
        def _():
            p = p_ref[...]
            t = t_ref[...]
            log_p = jnp.maximum(jnp.log(p), -100.0)
            log_1mp = jnp.maximum(jnp.log(1.0 - p), -100.0)
            e = -(t * log_p + (1.0 - t) * log_1mp)
            acc_b[...] += jnp.sum(e.reshape(-1, SUBLANES, LANES), axis=0)

        # --- epilogue: single cross-lane reduce, combine, write partial ---
        @pl.when(i == pl.num_programs(1) - 1)
        def _():
            s_m = jnp.sum(acc_m[...], axis=(0, 1), keepdims=True)
            s_b = jnp.sum(acc_b[...], axis=(0, 1), keepdims=True)
            total = s_m * inv_n_mse + l1 * (s_b * inv_n_bce)
            o_ref[...] = jnp.reshape(total, (1, 1, 1))

    partials = pl.pallas_call(
        kernel,
        out_shape=jax.ShapeDtypeStruct((NCORES, 1, 1), jnp.float32),
        grid_spec=pltpu.PrefetchScalarGridSpec(
            num_scalar_prefetch=0,
            grid=(NCORES, steps),
            in_specs=[
                pl.BlockSpec((bm, LANES), mse_map),
                pl.BlockSpec((bm, LANES), mse_map),
                pl.BlockSpec((bb, LANES), bce_map),
                pl.BlockSpec((bb, LANES), bce_map),
            ],
            out_specs=pl.BlockSpec((1, 1, 1), lambda c, i: (c, 0, 0)),
            scratch_shapes=[
                pltpu.VMEM((SUBLANES, LANES), jnp.float32),  # MSE accumulator
                pltpu.VMEM((SUBLANES, LANES), jnp.float32),  # BCE accumulator
            ],
        ),
        compiler_params=pltpu.CompilerParams(
            dimension_semantics=("parallel", "arbitrary")),
    )(x2d, y2d, p2d, t2d)
    return jnp.sum(partials)


@functools.partial(jax.jit, static_argnames=("l1scaling",))
def bce_l2_loss2g(outputs, targets, fake_outputs, real_target, l1scaling):
    # MSE side: pad both with 0 -> (0-0)^2 contributes nothing.
    x2d, n_mse, nblk_m, bm = _pack(outputs, 0.0)
    y2d, _, _, _ = _pack(targets, 0.0)
    # BCE side: pad pred=1 and target=1 -> -(1*log1 + 0*(-100)) == 0 exactly,
    # so no mask tensor is needed.
    p2d, n_bce, nblk_b, bb = _pack(fake_outputs, 1.0)
    t2d, _, _, _ = _pack(real_target, 1.0)
    return _fused_loss(x2d, y2d, p2d, t2d, n_mse, n_bce,
                       nblk_m, bm, nblk_b, bb, l1scaling)


if __name__ == "__main__":
    key = jax.random.PRNGKey(0)
    k1, k2, k3, _ = jax.random.split(key, 4)

    # Generator image pair (NCHW like PyTorch) and discriminator outputs.
    outputs = jax.random.normal(k1, (2, 4, 16, 16), dtype=jnp.float32)
    targets = jax.random.normal(k2, (2, 4, 16, 16), dtype=jnp.float32)
    # fake_outputs must be probabilities in (0, 1) for binary_cross_entropy.
    fake_outputs = jax.nn.sigmoid(
        jax.random.normal(k3, (2, 1, 16, 16), dtype=jnp.float32))
    real_target = jnp.ones((2, 1, 16, 16), dtype=jnp.float32)

    l1scaling = 0.5

    loss = bce_l2_loss2g(outputs, targets, fake_outputs, real_target, l1scaling)
    loss = jax.block_until_ready(loss)

    # Sanity check against a pure-JAX reference of the PyTorch semantics.
    ref_mse = jnp.mean((outputs - targets) ** 2)
    ref_bce = jnp.mean(
        -(real_target * jnp.maximum(jnp.log(fake_outputs), -100.0)
          + (1.0 - real_target) * jnp.maximum(jnp.log(1.0 - fake_outputs), -100.0)))
    ref = ref_mse + l1scaling * ref_bce
    assert jnp.allclose(loss, ref, rtol=1e-5, atol=1e-5), (loss, ref)

    print("KERNEL_OK")
</pallas_src>

<mosaic_0001>
module attributes {stable_mosaic.version = 11 : i64} {
  func.func @kernel(%arg0: i32, %arg1: i32, %arg2: memref<16x128xf32, #tpu.memory_space<vmem>>, %arg3: memref<16x128xf32, #tpu.memory_space<vmem>>, %arg4: memref<8x128xf32, #tpu.memory_space<vmem>>, %arg5: memref<8x128xf32, #tpu.memory_space<vmem>>, %arg6: memref<1x1x1xf32, #tpu.memory_space<vmem>>, %arg7: memref<8x128xf32, #tpu.memory_space<vmem>>, %arg8: memref<8x128xf32, #tpu.memory_space<vmem>>) attributes {dimension_semantics = [#tpu.dimension_semantics<parallel>, #tpu.dimension_semantics<arbitrary>], iteration_bounds = array<i64: 2, 1>, scalar_prefetch = 0 : i64, scratch_operands = 2 : i64, tpu.core_type = #tpu.core_type<tc>, window_params = [{transform_indices = @transform_0, window_bounds = array<i64: 16, 128>}, {transform_indices = @transform_1, window_bounds = array<i64: 16, 128>}, {transform_indices = @transform_2, window_bounds = array<i64: 8, 128>}, {transform_indices = @transform_3, window_bounds = array<i64: 8, 128>}, {transform_indices = @transform_4, window_bounds = array<i64: 1, 1, 1>}]} {
    %c0_i32 = arith.constant 0 : i32
    %0 = arith.cmpi eq, %arg1, %c0_i32 : i32
    %1 = arith.extui %0 : i1 to i32
    %c0_i32_0 = arith.constant 0 : i32
    %2 = arith.cmpi ne, %1, %c0_i32_0 : i32
    scf.if %2 {
      %cst = arith.constant 0.000000e+00 : f32
      %20 = vector.broadcast %cst : f32 to vector<8x128xf32>
      %c0 = arith.constant 0 : index
      %c0_10 = arith.constant 0 : index
      %21 = vector.load %arg7[%c0, %c0_10] : memref<8x128xf32, #tpu.memory_space<vmem>>, vector<8x128xf32>
      tpu.vector_store %arg7[%c0, %c0_10], %20 {strides = array<i32>} : memref<8x128xf32, #tpu.memory_space<vmem>>, vector<8x128xf32>,
      %cst_11 = arith.constant 0.000000e+00 : f32
      %22 = vector.broadcast %cst_11 : f32 to vector<8x128xf32>
      %c0_12 = arith.constant 0 : index
      %c0_13 = arith.constant 0 : index
      %23 = vector.load %arg8[%c0_12, %c0_13] : memref<8x128xf32, #tpu.memory_space<vmem>>, vector<8x128xf32>
      tpu.vector_store %arg8[%c0_12, %c0_13], %22 {strides = array<i32>} : memref<8x128xf32, #tpu.memory_space<vmem>>, vector<8x128xf32>,
    } else {
    }
    %c1_i32 = arith.constant 1 : i32
    %3 = arith.cmpi slt, %arg1, %c1_i32 : i32
    %c1_i32_1 = arith.constant 1 : i32
    %4 = arith.muli %arg0, %c1_i32_1 : i32
    %5 = arith.addi %4, %arg1 : i32
    %c1_i32_2 = arith.constant 1 : i32
    %6 = arith.cmpi slt, %5, %c1_i32_2 : i32
    %7 = arith.andi %3, %6 : i1
    %8 = arith.extui %7 : i1 to i32
    %c0_i32_3 = arith.constant 0 : i32
    %9 = arith.cmpi ne, %8, %c0_i32_3 : i32
    scf.if %9 {
      %c0 = arith.constant 0 : index
      %c0_10 = arith.constant 0 : index
      %20 = vector.load %arg2[%c0, %c0_10] : memref<16x128xf32, #tpu.memory_space<vmem>>, vector<16x128xf32>
      %c0_11 = arith.constant 0 : index
      %c0_12 = arith.constant 0 : index
      %21 = vector.load %arg3[%c0_11, %c0_12] : memref<16x128xf32, #tpu.memory_space<vmem>>, vector<16x128xf32>
      %22 = arith.subf %20, %21 : vector<16x128xf32>
      %c0_13 = arith.constant 0 : index
      %c0_14 = arith.constant 0 : index
      %23 = vector.load %arg7[%c0_13, %c0_14] : memref<8x128xf32, #tpu.memory_space<vmem>>, vector<8x128xf32>
      %24 = arith.mulf %22, %22 : vector<16x128xf32>
      %25 = vector.shape_cast %24 : vector<16x128xf32> to vector<2x8x128xf32>
      %cst = arith.constant dense<0.000000e+00> : vector<8x128xf32>
      %26 = vector.multi_reduction <add>, %25, %cst [0] : vector<2x8x128xf32> to vector<8x128xf32>
      %27 = arith.addf %23, %26 : vector<8x128xf32>
      %c0_15 = arith.constant 0 : index
      %c0_16 = arith.constant 0 : index
      %28 = vector.load %arg7[%c0_15, %c0_16] : memref<8x128xf32, #tpu.memory_space<vmem>>, vector<8x128xf32>
      tpu.vector_store %arg7[%c0_15, %c0_16], %27 {strides = array<i32>} : memref<8x128xf32, #tpu.memory_space<vmem>>, vector<8x128xf32>,
    } else {
    }
    %c1_i32_4 = arith.constant 1 : i32
    %10 = arith.cmpi slt, %arg1, %c1_i32_4 : i32
    %c1_i32_5 = arith.constant 1 : i32
    %11 = arith.muli %arg0, %c1_i32_5 : i32
    %12 = arith.addi %11, %arg1 : i32
    %c1_i32_6 = arith.constant 1 : i32
    %13 = arith.cmpi slt, %12, %c1_i32_6 : i32
    %14 = arith.andi %10, %13 : i1
    %15 = arith.extui %14 : i1 to i32
    %c0_i32_7 = arith.constant 0 : i32
    %16 = arith.cmpi ne, %15, %c0_i32_7 : i32
    scf.if %16 {
      %c0 = arith.constant 0 : index
      %c0_10 = arith.constant 0 : index
      %20 = vector.load %arg4[%c0, %c0_10] : memref<8x128xf32, #tpu.memory_space<vmem>>, vector<8x128xf32>
      %c0_11 = arith.constant 0 : index
      %c0_12 = arith.constant 0 : index
      %21 = vector.load %arg5[%c0_11, %c0_12] : memref<8x128xf32, #tpu.memory_space<vmem>>, vector<8x128xf32>
      %22 = math.log %20 : vector<8x128xf32>
      %cst = arith.constant -1.000000e+02 : f32
      %23 = vector.broadcast %cst : f32 to vector<8x128xf32>
      %24 = arith.maximumf %22, %23 : vector<8x128xf32>
      %cst_13 = arith.constant 1.000000e+00 : f32
      %25 = vector.broadcast %cst_13 : f32 to vector<8x128xf32>
      %26 = arith.subf %25, %20 : vector<8x128xf32>
      %27 = math.log %26 : vector<8x128xf32>
      %cst_14 = arith.constant -1.000000e+02 : f32
      %28 = vector.broadcast %cst_14 : f32 to vector<8x128xf32>
      %29 = arith.maximumf %27, %28 : vector<8x128xf32>
      %30 = arith.mulf %21, %24 : vector<8x128xf32>
      %cst_15 = arith.constant 1.000000e+00 : f32
      %31 = vector.broadcast %cst_15 : f32 to vector<8x128xf32>
      %32 = arith.subf %31, %21 : vector<8x128xf32>
      %33 = arith.mulf %32, %29 : vector<8x128xf32>
      %34 = arith.addf %30, %33 : vector<8x128xf32>
      %cst_16 = arith.constant 0.000000e+00 : f32
      %35 = vector.broadcast %cst_16 : f32 to vector<8x128xf32>
      %36 = arith.subf %35, %34 : vector<8x128xf32>
      %c0_17 = arith.constant 0 : index
      %c0_18 = arith.constant 0 : index
      %37 = vector.load %arg8[%c0_17, %c0_18] : memref<8x128xf32, #tpu.memory_space<vmem>>, vector<8x128xf32>
      %38 = vector.shape_cast %36 : vector<8x128xf32> to vector<1x8x128xf32>
      %cst_19 = arith.constant dense<0.000000e+00> : vector<8x128xf32>
      %39 = vector.multi_reduction <add>, %38, %cst_19 [0] : vector<1x8x128xf32> to vector<8x128xf32>
      %40 = arith.addf %37, %39 : vector<8x128xf32>
      %c0_20 = arith.constant 0 : index
      %c0_21 = arith.constant 0 : index
      %41 = vector.load %arg8[%c0_20, %c0_21] : memref<8x128xf32, #tpu.memory_space<vmem>>, vector<8x128xf32>
      tpu.vector_store %arg8[%c0_20, %c0_21], %40 {strides = array<i32>} : memref<8x128xf32, #tpu.memory_space<vmem>>, vector<8x128xf32>,
    } else {
    }
    %c0_i32_8 = arith.constant 0 : i32
    %17 = arith.cmpi eq, %arg1, %c0_i32_8 : i32
    %18 = arith.extui %17 : i1 to i32
    %c0_i32_9 = arith.constant 0 : i32
    %19 = arith.cmpi ne, %18, %c0_i32_9 : i32
    scf.if %19 {
      %c0 = arith.constant 0 : index
      %c0_10 = arith.constant 0 : index
      %20 = vector.load %arg7[%c0, %c0_10] : memref<8x128xf32, #tpu.memory_space<vmem>>, vector<8x128xf32>
      %21 = vector.shape_cast %20 : vector<8x128xf32> to vector<1x8x128xf32>
      %cst = arith.constant dense<0.000000e+00> : vector<1xf32>
      %22 = vector.multi_reduction <add>, %21, %cst [1, 2] : vector<1x8x128xf32> to vector<1xf32>
      %23 = vector.shape_cast %22 : vector<1xf32> to vector<1x1x1xf32>
      %24 = vector.extract %23[0, 0, 0] : f32 from vector<1x1x1xf32>
      %25 = vector.broadcast %24 : f32 to vector<1x1xf32>
      %c0_11 = arith.constant 0 : index
      %c0_12 = arith.constant 0 : index
      %26 = vector.load %arg8[%c0_11, %c0_12] : memref<8x128xf32, #tpu.memory_space<vmem>>, vector<8x128xf32>
      %27 = vector.shape_cast %26 : vector<8x128xf32> to vector<1x8x128xf32>
      %cst_13 = arith.constant dense<0.000000e+00> : vector<1xf32>
      %28 = vector.multi_reduction <add>, %27, %cst_13 [1, 2] : vector<1x8x128xf32> to vector<1xf32>
      %29 = vector.shape_cast %28 : vector<1xf32> to vector<1x1x1xf32>
      %30 = vector.extract %29[0, 0, 0] : f32 from vector<1x1x1xf32>
      %31 = vector.broadcast %30 : f32 to vector<1x1xf32>
      %cst_14 = arith.constant 4.8828125E-4 : f32
      %32 = vector.broadcast %cst_14 : f32 to vector<1x1xf32>
      %33 = arith.mulf %25, %32 : vector<1x1xf32>
      %cst_15 = arith.constant 0.001953125 : f32
      %34 = vector.broadcast %cst_15 : f32 to vector<1x1xf32>
      %35 = arith.mulf %31, %34 : vector<1x1xf32>
      %cst_16 = arith.constant 5.000000e-01 : f32
      %36 = vector.broadcast %cst_16 : f32 to vector<1x1xf32>
      %37 = arith.mulf %36, %35 : vector<1x1xf32>
      %38 = arith.addf %33, %37 : vector<1x1xf32>
      %39 = vector.shape_cast %38 : vector<1x1xf32> to vector<1x1x1xf32>
      %c0_17 = arith.constant 0 : index
      %c0_18 = arith.constant 0 : index
      %c0_19 = arith.constant 0 : index
      %40 = vector.load %arg6[%c0_17, %c0_18, %c0_19] : memref<1x1x1xf32, #tpu.memory_space<vmem>>, vector<1x1x1xf32>
      tpu.vector_store %arg6[%c0_17, %c0_18, %c0_19], %39 {strides = array<i32>} : memref<1x1x1xf32, #tpu.memory_space<vmem>>, vector<1x1x1xf32>,
    } else {
    }
    return
  }
  func.func @transform_0(%arg0: i32, %arg1: i32) -> (i32, i32) {
    %c1_i32 = arith.constant 1 : i32
    %0 = arith.muli %arg0, %c1_i32 : i32
    %1 = arith.addi %0, %arg1 : i32
    %c0_i32 = arith.constant 0 : i32
    %2 = arith.minsi %1, %c0_i32 : i32
    %c0_i32_0 = arith.constant 0 : i32
    %c0_i32_1 = arith.constant 0 : i32
    return %2, %c0_i32_0 : i32, i32
  }
  func.func @transform_1(%arg0: i32, %arg1: i32) -> (i32, i32) {
    %c1_i32 = arith.constant 1 : i32
    %0 = arith.muli %arg0, %c1_i32 : i32
    %1 = arith.addi %0, %arg1 : i32
    %c0_i32 = arith.constant 0 : i32
    %2 = arith.minsi %1, %c0_i32 : i32
    %c0_i32_0 = arith.constant 0 : i32
    %c0_i32_1 = arith.constant 0 : i32
    return %2, %c0_i32_0 : i32, i32
  }
  func.func @transform_2(%arg0: i32, %arg1: i32) -> (i32, i32) {
    %c1_i32 = arith.constant 1 : i32
    %0 = arith.muli %arg0, %c1_i32 : i32
    %1 = arith.addi %0, %arg1 : i32
    %c0_i32 = arith.constant 0 : i32
    %2 = arith.minsi %1, %c0_i32 : i32
    %c0_i32_0 = arith.constant 0 : i32
    %c0_i32_1 = arith.constant 0 : i32
    return %2, %c0_i32_0 : i32, i32
  }
  func.func @transform_3(%arg0: i32, %arg1: i32) -> (i32, i32) {
    %c1_i32 = arith.constant 1 : i32
    %0 = arith.muli %arg0, %c1_i32 : i32
    %1 = arith.addi %0, %arg1 : i32
    %c0_i32 = arith.constant 0 : i32
    %2 = arith.minsi %1, %c0_i32 : i32
    %c0_i32_0 = arith.constant 0 : i32
    %c0_i32_1 = arith.constant 0 : i32
    return %2, %c0_i32_0 : i32, i32
  }
  func.func @transform_4(%arg0: i32, %arg1: i32) -> (i32, i32, i32) {
    %c0_i32 = arith.constant 0 : i32
    %c0_i32_0 = arith.constant 0 : i32
    %c0_i32_1 = arith.constant 0 : i32
    return %arg0, %c0_i32, %c0_i32_0 : i32, i32, i32
  }
}

</mosaic_0001>

<llo_original>
// kernel: bce_l2_loss2g.1
$region0: #{bce_l2_loss2g.1}
  #allocation0 [shape = 'u32[]', space=smem, size = 0x4, offset = 0x4, fixed_abs, tag = 'smem constant byte address 0x4 - core index']
  #allocation1 [shape = 'u32[144,128]{1,0:T(1,128)}', space=vmem, size = 0x12000, scoped, tag = 'internal scratch']
  #allocation2 [shape = 'f32[8,128]{1,0:T(8,128)}', space=vmem, size = 0x1000, scoped, tag = 'scratch operand']
  #allocation3 [shape = 'f32[8,128]{1,0:T(8,128)}', space=vmem, size = 0x1000, scoped, tag = 'scratch operand']
  %s0 = inlined_call_operand.vmem [shape: f32[16,128], index: 0, kind: input, shape index: {}]
  %s1 = inlined_call_operand.vmem [shape: f32[16,128], index: 1, kind: input, shape index: {}]
  %s2 = inlined_call_operand.vmem [shape: f32[8,128], index: 2, kind: input, shape index: {}]
  %s3 = inlined_call_operand.vmem [shape: f32[8,128], index: 3, kind: input, shape index: {}]
  %s4 = inlined_call_operand.vmem [shape: f32[2,1,1], index: 4, kind: output, shape index: {}]
  %s5 = sld [smem:[#allocation0]]
  $region61: #{bce_l2_loss2g.1} parent=0
    _
  %s7 = ssub.s32 1, %s5
  %s8 = scalar_select 0, %s7, %s5
  loop: start=0, step=1, limit=4
  $region2: #{bce_l2_loss2g.1} parent=0 // loop_pre_header
    _
  $region3: #{bce_l2_loss2g.1} parent=0 // loop_header
    %s10 = sphi 0, %s14
    %p11 = scmp.ge.s32.totalorder %s10, 4
    %s17 = sphi 0, %s29
    %s18 = sphi 0, %s25
    %s19 = sphi 0, %s17
    %s20 = sphi 0, %s18
    %s21 = sphi 0, %s19
    %s22 = sphi 0, %s20
    %s38 = sphi 0, %s40
    %s41 = sphi 0, %s38
    %s42 = sphi 0, %s41
    %s58 = sphi 0, %s42
    %s70 = sphi 0, %s72
    %s73 = sphi 0, %s70
    %s74 = sphi 0, %s73
    %s90 = sphi 0, %s74
    %s102 = sphi 0, %s104
    %s105 = sphi 0, %s102
    %s106 = sphi 0, %s105
    %s122 = sphi 0, %s106
    %s134 = sphi 0, %s136
    %s137 = sphi 0, %s134
    %s138 = sphi 0, %s137
    %s154 = sphi 0, %s138
    %s160 = sphi 0, %s162
    %s163 = sphi 0, %s160
    %s164 = sphi 0, %s163
    %s180 = sphi 0, %s164
  $region4: #{bce_l2_loss2g.1} parent=0 // loop_header_branch
    %13 = sbr.rel (%p11) target = $region8
  $region5: #{bce_l2_loss2g.1} parent=0 // loop_body
    %s15 = ssub.s32 %s10, 1
    %s16 = ssub.s32 %s10, 2
    %s23 = sadd.s32 1, %s18
    %p24 = scmp.ge.s32.totalorder %s23, 1
    %s25 = scalar_select %p24, 0, %s23
    %s26 = sadd.s32 1, %s17
    %s27 = scalar_select %p24, %s26, %s17
    %p28 = scmp.ge.s32.totalorder %s27, 2
    %s29 = scalar_select %p28, 0, %s27
    %s30 = sadd.s32 %s17, %s18
    %p31 = scmp.lt.s32.totalorder %s30, 0
    %s32 = scalar_select %p31, %s30, 0
    %s33 = sadd.s32 %s29, %s25
    %p34 = scmp.lt.s32.totalorder %s33, 0
    %s35 = scalar_select %p34, %s33, 0
    %s36 = ssub.s32 %s32, %s35
    %p37 = scmp.eq.s32.totalorder %s36, 0
    %s39 = sadd.s32 %s38, 1
    %s40 = scalar_select %p37, %s38, %s39
    %p43 = pneg %p37
    %p44 = scmp.eq.s32.totalorder %s10, 1
    %p45 = por %p43, %p44
    %p46 = scmp.ne.s32.totalorder %s38, %s41
    %p47 = scmp.eq.s32.totalorder %s10, 0
    %p48 = por %p46, %p47
    %p49 = scmp.ne.s32.totalorder %s38, %s41
    %p50 = scmp.eq.s32.totalorder %s15, 1
    %p51 = por %p49, %p50
    %p52 = scmp.ne.s32.totalorder %s41, %s42
    %p53 = scmp.eq.s32.totalorder %s15, 0
    %p54 = por %p52, %p53
    %p55 = scmp.ne.s32.totalorder %s41, %s42
    %p56 = scmp.eq.s32.totalorder %s16, 1
    %p57 = por %p55, %p56
    %p59 = scmp.ne.s32.totalorder %s42, %s58
    %p60 = scmp.eq.s32.totalorder %s16, 0
    %p61 = por %p59, %p60
    %s62 = sadd.s32 %s17, %s18
    %p63 = scmp.lt.s32.totalorder %s62, 0
    %s64 = scalar_select %p63, %s62, 0
    %s65 = sadd.s32 %s29, %s25
    %p66 = scmp.lt.s32.totalorder %s65, 0
    %s67 = scalar_select %p66, %s65, 0
    %s68 = ssub.s32 %s64, %s67
    %p69 = scmp.eq.s32.totalorder %s68, 0
    %s71 = sadd.s32 %s70, 1
    %s72 = scalar_select %p69, %s70, %s71
    %p75 = pneg %p69
    %p76 = scmp.eq.s32.totalorder %s10, 1
    %p77 = por %p75, %p76
    %p78 = scmp.ne.s32.totalorder %s70, %s73
    %p79 = scmp.eq.s32.totalorder %s10, 0
    %p80 = por %p78, %p79
    %p81 = scmp.ne.s32.totalorder %s70, %s73
    %p82 = scmp.eq.s32.totalorder %s15, 1
    %p83 = por %p81, %p82
    %p84 = scmp.ne.s32.totalorder %s73, %s74
    %p85 = scmp.eq.s32.totalorder %s15, 0
    %p86 = por %p84, %p85
    %p87 = scmp.ne.s32.totalorder %s73, %s74
    %p88 = scmp.eq.s32.totalorder %s16, 1
    %p89 = por %p87, %p88
    %p91 = scmp.ne.s32.totalorder %s74, %s90
    %p92 = scmp.eq.s32.totalorder %s16, 0
    %p93 = por %p91, %p92
    %s94 = sadd.s32 %s17, %s18
    %p95 = scmp.lt.s32.totalorder %s94, 0
    %s96 = scalar_select %p95, %s94, 0
    %s97 = sadd.s32 %s29, %s25
    %p98 = scmp.lt.s32.totalorder %s97, 0
    %s99 = scalar_select %p98, %s97, 0
    %s100 = ssub.s32 %s96, %s99
    %p101 = scmp.eq.s32.totalorder %s100, 0
    %s103 = sadd.s32 %s102, 1
    %s104 = scalar_select %p101, %s102, %s103
    %p107 = pneg %p101
    %p108 = scmp.eq.s32.totalorder %s10, 1
    %p109 = por %p107, %p108
    %p110 = scmp.ne.s32.totalorder %s102, %s105
    %p111 = scmp.eq.s32.totalorder %s10, 0
    %p112 = por %p110, %p111
    %p113 = scmp.ne.s32.totalorder %s102, %s105
    %p114 = scmp.eq.s32.totalorder %s15, 1
    %p115 = por %p113, %p114
    %p116 = scmp.ne.s32.totalorder %s105, %s106
    %p117 = scmp.eq.s32.totalorder %s15, 0
    %p118 = por %p116, %p117
    %p119 = scmp.ne.s32.totalorder %s105, %s106
    %p120 = scmp.eq.s32.totalorder %s16, 1
    %p121 = por %p119, %p120
    %p123 = scmp.ne.s32.totalorder %s106, %s122
    %p124 = scmp.eq.s32.totalorder %s16, 0
    %p125 = por %p123, %p124
    %s126 = sadd.s32 %s17, %s18
    %p127 = scmp.lt.s32.totalorder %s126, 0
    %s128 = scalar_select %p127, %s126, 0
    %s129 = sadd.s32 %s29, %s25
    %p130 = scmp.lt.s32.totalorder %s129, 0
    %s131 = scalar_select %p130, %s129, 0
    %s132 = ssub.s32 %s128, %s131
    %p133 = scmp.eq.s32.totalorder %s132, 0
    %s135 = sadd.s32 %s134, 1
    %s136 = scalar_select %p133, %s134, %s135
    %p139 = pneg %p133
    %p140 = scmp.eq.s32.totalorder %s10, 1
    %p141 = por %p139, %p140
    %p142 = scmp.ne.s32.totalorder %s134, %s137
    %p143 = scmp.eq.s32.totalorder %s10, 0
    %p144 = por %p142, %p143
    %p145 = scmp.ne.s32.totalorder %s134, %s137
    %p146 = scmp.eq.s32.totalorder %s15, 1
    %p147 = por %p145, %p146
    %p148 = scmp.ne.s32.totalorder %s137, %s138
    %p149 = scmp.eq.s32.totalorder %s15, 0
    %p150 = por %p148, %p149
    %p151 = scmp.ne.s32.totalorder %s137, %s138
    %p152 = scmp.eq.s32.totalorder %s16, 1
    %p153 = por %p151, %p152
    %p155 = scmp.ne.s32.totalorder %s138, %s154
    %p156 = scmp.eq.s32.totalorder %s16, 0
    %p157 = por %p155, %p156
    %s158 = ssub.s32 %s17, %s29
    %p159 = scmp.eq.s32.totalorder %s158, 0
    %s161 = sadd.s32 %s160, 1
    %s162 = scalar_select %p159, %s160, %s161
    %p165 = pneg %p159
    %p166 = scmp.eq.s32.totalorder %s10, 1
    %p167 = por %p165, %p166
    %p168 = scmp.ne.s32.totalorder %s160, %s163
    %p169 = scmp.eq.s32.totalorder %s10, 0
    %p170 = por %p168, %p169
    %p171 = scmp.ne.s32.totalorder %s160, %s163
    %p172 = scmp.eq.s32.totalorder %s15, 1
    %p173 = por %p171, %p172
    %p174 = scmp.ne.s32.totalorder %s163, %s164
    %p175 = scmp.eq.s32.totalorder %s15, 0
    %p176 = por %p174, %p175
    %p177 = scmp.ne.s32.totalorder %s163, %s164
    %p178 = scmp.eq.s32.totalorder %s16, 1
    %p179 = por %p177, %p178
    %p181 = scmp.ne.s32.totalorder %s164, %s180
    %p182 = scmp.eq.s32.totalorder %s16, 0
    %p183 = por %p181, %p182
    %p184 = scmp.le.s32.totalorder 1, %s10
    %p185 = scmp.lt.s32.totalorder %s10, 3
    %p186 = pnand %p184, %p185
    %p187 = pneg %p186
    // Predicated region
    $region9: #{bce_l2_loss2g.1} parent=5 // pred_check
      _
    $region10: #{bce_l2_loss2g.1} parent=5 // pred_check_branch
      %189 = sbr.rel (%p186) target = $region12
    $region11: #{bce_l2_loss2g.1} parent=5 // pred_region
      %s190 = ssub.s32 %s10, 1
    $region12: #{bce_l2_loss2g.1} parent=5 // pred_fallthru
      _
    %p191 = scmp.lt.s32.totalorder %s10, 2
    // Predicated region
    $region13: #{bce_l2_loss2g.1} parent=5 // pred_check
      %p192 = pneg %p191
    $region14: #{bce_l2_loss2g.1} parent=5 // pred_check_branch
      %194 = sbr.rel (%p192) target = $region16
    $region15: #{bce_l2_loss2g.1} parent=5 // pred_region
      // Predicated region
      $region17: #{bce_l2_loss2g.1} parent=15 // pred_check
        %p195 = pneg %p48
      $region18: #{bce_l2_loss2g.1} parent=15 // pred_check_branch
        %197 = sbr.rel (%p195) target = $region20
      $region19: #{bce_l2_loss2g.1} parent=15 // pred_region
        %s198 = sadd.s32 %s17, %s18
        %p199 = scmp.lt.s32.totalorder %s198, 0
        %s200 = scalar_select %p199, %s198, 0
        %s201 = smul.u32 2, %s200
        %p202 = scmp.lt.s32.totalorder %s201, 1
        %s203 = scalar_select %p202, %s201, 1
        %s204 = smul.addr %s203, 8
        %s205 = scalar_lea.vmem %s0, %s204
        %s206 = sadd.s32 %s17, %s18
        %p207 = scmp.lt.s32.totalorder %s206, 0
        %s208 = scalar_select %p207, %s206, 0
        %s209 = smul.u32 2, %s208
      $region20: #{bce_l2_loss2g.1} parent=15 // pred_fallthru
        _
      // Predicated region
      $region21: #{bce_l2_loss2g.1} parent=15 // pred_check
        %p210 = pneg %p80
      $region22: #{bce_l2_loss2g.1} parent=15 // pred_check_branch
        %212 = sbr.rel (%p210) target = $region24
      $region23: #{bce_l2_loss2g.1} parent=15 // pred_region
        %s213 = sadd.s32 %s17, %s18
        %p214 = scmp.lt.s32.totalorder %s213, 0
        %s215 = scalar_select %p214, %s213, 0
        %s216 = smul.u32 2, %s215
        %p217 = scmp.lt.s32.totalorder %s216, 1
        %s218 = scalar_select %p217, %s216, 1
        %s219 = smul.addr %s218, 8
        %s220 = scalar_lea.vmem %s1, %s219
        %s221 = sadd.s32 %s17, %s18
        %p222 = scmp.lt.s32.totalorder %s221, 0
        %s223 = scalar_select %p222, %s221, 0
        %s224 = smul.u32 2, %s223
      $region24: #{bce_l2_loss2g.1} parent=15 // pred_fallthru
        _
      // Predicated region
      $region25: #{bce_l2_loss2g.1} parent=15 // pred_check
        %p225 = pneg %p112
      $region26: #{bce_l2_loss2g.1} parent=15 // pred_check_branch
        %227 = sbr.rel (%p225) target = $region28
      $region27: #{bce_l2_loss2g.1} parent=15 // pred_region
        %s228 = sadd.s32 %s17, %s18
        %p229 = scmp.lt.s32.totalorder %s228, 0
        %s230 = scalar_select %p229, %s228, 0
        %p231 = scmp.lt.s32.totalorder %s230, 0
        %s232 = scalar_select %p231, %s230, 0
        %s233 = smul.addr %s232, 8
        %s234 = scalar_lea.vmem %s2, %s233
        %s235 = sadd.s32 %s17, %s18
        %p236 = scmp.lt.s32.totalorder %s235, 0
        %s237 = scalar_select %p236, %s235, 0
      $region28: #{bce_l2_loss2g.1} parent=15 // pred_fallthru
        _
      // Predicated region
      $region29: #{bce_l2_loss2g.1} parent=15 // pred_check
        %p238 = pneg %p144
      $region30: #{bce_l2_loss2g.1} parent=15 // pred_check_branch
        %240 = sbr.rel (%p238) target = $region32
      $region31: #{bce_l2_loss2g.1} parent=15 // pred_region
        %s241 = sadd.s32 %s17, %s18
        %p242 = scmp.lt.s32.totalorder %s241, 0
        %s243 = scalar_select %p242, %s241, 0
        %p244 = scmp.lt.s32.totalorder %s243, 0
        %s245 = scalar_select %p244, %s243, 0
        %s246 = smul.addr %s245, 8
        %s247 = scalar_lea.vmem %s3, %s246
        %s248 = sadd.s32 %s17, %s18
        %p249 = scmp.lt.s32.totalorder %s248, 0
        %s250 = scalar_select %p249, %s248, 0
      $region32: #{bce_l2_loss2g.1} parent=15 // pred_fallthru
        _
    $region16: #{bce_l2_loss2g.1} parent=5 // pred_fallthru
      _
    %p251 = scmp.le.s32.totalorder 1, %s10
    %p252 = scmp.lt.s32.totalorder %s10, 3
    %p253 = pnand %p251, %p252
    %p254 = pneg %p253
    // Predicated region
    $region33: #{bce_l2_loss2g.1} parent=5 // pred_check
      _
    $region34: #{bce_l2_loss2g.1} parent=5 // pred_check_branch
      %256 = sbr.rel (%p253) target = $region36
    $region35: #{bce_l2_loss2g.1} parent=5 // pred_region
      %s257 = ssub.s32 %s10, 1
      %s258 = sadd.s32 %s19, %s20
      %p259 = scmp.lt.s32.totalorder %s258, 0
      %s260 = scalar_select %p259, %s258, 0
      %s261 = smul.u32 2, %s260
      %p262 = scmp.lt.s32.totalorder %s261, 1
      %s263 = scalar_select %p262, %s261, 1
      %s264 = smul.addr %s263, 8
      %s265 = scalar_lea.vmem %s0, %s264
      %p266 = pneg %p54
      %p267 = pneg %p51
      %s268 = sadd.s32 %s19, %s20
      %p269 = scmp.lt.s32.totalorder %s268, 0
      %s270 = scalar_select %p269, %s268, 0
      %s271 = smul.u32 2, %s270
      %p272 = scmp.lt.s32.totalorder %s271, 1
      %s273 = scalar_select %p272, %s271, 1
      %s274 = smul.addr %s273, 8
      %s275 = scalar_lea.vmem %s1, %s274
      %p276 = pneg %p86
      %p277 = pneg %p83
      %s278 = sadd.s32 %s19, %s20
      %p279 = scmp.lt.s32.totalorder %s278, 0
      %s280 = scalar_select %p279, %s278, 0
      %p281 = scmp.lt.s32.totalorder %s280, 0
      %s282 = scalar_select %p281, %s280, 0
      %s283 = smul.addr %s282, 8
      %s284 = scalar_lea.vmem %s2, %s283
      %p285 = pneg %p118
      %p286 = pneg %p115
      %s287 = sadd.s32 %s19, %s20
      %p288 = scmp.lt.s32.totalorder %s287, 0
      %s289 = scalar_select %p288, %s287, 0
      %p290 = scmp.lt.s32.totalorder %s289, 0
      %s291 = scalar_select %p290, %s289, 0
      %s292 = smul.addr %s291, 8
      %s293 = scalar_lea.vmem %s3, %s292
      %p294 = pneg %p150
      %p295 = pneg %p147
      %p296 = pneg %p176
      %p297 = pneg %p173
      %p298 = scmp.lt.s32.totalorder %s19, 1
      %s299 = scalar_select %p298, %s19, 1
      %s300 = scalar_lea.vmem %s4, %s299
      %s301 = sadd.s32 %s19, %s20
      %p302 = scmp.lt.s32.totalorder %s301, 0
      %s303 = scalar_select %p302, %s301, 0
      %s304 = smul.u32 2, %s303
      %p305 = scmp.lt.s32.totalorder %s304, 1
      %s306 = scalar_select %p305, %s304, 1
      %s307 = smul.addr %s306, 8
      %s308 = scalar_lea.vmem %s0, %s307
      %s309 = sadd.s32 %s19, %s20
      %p310 = scmp.lt.s32.totalorder %s309, 0
      %s311 = scalar_select %p310, %s309, 0
      %s312 = smul.u32 2, %s311
      %s313 = sadd.s32 %s19, %s20
      %p314 = scmp.lt.s32.totalorder %s313, 0
      %s315 = scalar_select %p314, %s313, 0
      %s316 = smul.u32 2, %s315
      %p317 = scmp.lt.s32.totalorder %s316, 1
      %s318 = scalar_select %p317, %s316, 1
      %s319 = smul.addr %s318, 8
      %s320 = scalar_lea.vmem %s1, %s319
      %s321 = sadd.s32 %s19, %s20
      %p322 = scmp.lt.s32.totalorder %s321, 0
      %s323 = scalar_select %p322, %s321, 0
      %s324 = smul.u32 2, %s323
      %s325 = sadd.s32 %s19, %s20
      %p326 = scmp.lt.s32.totalorder %s325, 0
      %s327 = scalar_select %p326, %s325, 0
      %p328 = scmp.lt.s32.totalorder %s327, 0
      %s329 = scalar_select %p328, %s327, 0
      %s330 = smul.addr %s329, 8
      %s331 = scalar_lea.vmem %s2, %s330
      %s332 = sadd.s32 %s19, %s20
      %p333 = scmp.lt.s32.totalorder %s332, 0
      %s334 = scalar_select %p333, %s332, 0
      %s335 = sadd.s32 %s19, %s20
      %p336 = scmp.lt.s32.totalorder %s335, 0
      %s337 = scalar_select %p336, %s335, 0
      %p338 = scmp.lt.s32.totalorder %s337, 0
      %s339 = scalar_select %p338, %s337, 0
      %s340 = smul.addr %s339, 8
      %s341 = scalar_lea.vmem %s3, %s340
      %s342 = sadd.s32 %s19, %s20
      %p343 = scmp.lt.s32.totalorder %s342, 0
      %s344 = scalar_select %p343, %s342, 0
      %p345 = scmp.lt.s32.totalorder %s19, 1
      %s346 = scalar_select %p345, %s19, 1
      %s347 = scalar_lea.vmem %s4, %s346
      %p348 = scmp.eq.s32.totalorder %s20, 0
      // Predicated region
      $region37: #{bce_l2_loss2g.1} parent=35 // pred_check
        %p349 = pneg %p348
      $region38: #{bce_l2_loss2g.1} parent=35 // pred_check_branch
        %351 = sbr.rel (%p349) target = $region40
      $region39: #{bce_l2_loss2g.1} parent=35 // pred_region
        %352 = vst [vmem:[#allocation2] sm:$0xff] 0.0
        %353 = vst [vmem:[#allocation3] sm:$0xff] 0.0
      $region40: #{bce_l2_loss2g.1} parent=35 // pred_fallthru
        _
      %p354 = scmp.lt.s32.totalorder %s20, 1
      %s355 = sadd.s32 %s19, %s20
      %p356 = scmp.lt.s32.totalorder %s355, 1
      %p357 = pnand %p354, %p356
      %p358 = pneg %p357
      // Predicated region
      $region41: #{bce_l2_loss2g.1} parent=35 // pred_check
        _
      $region42: #{bce_l2_loss2g.1} parent=35 // pred_check_branch
        %360 = sbr.rel (%p357) target = $region44
      $region43: #{bce_l2_loss2g.1} parent=35 // pred_region
        %v361 = vld [vmem:[%s308] sm:$0xff]
        %v362 = vld [vmem:[%s308 + $0x8] sm:$0xff]
        %v363 = vld [vmem:[%s320] sm:$0xff]
        %v364 = vld [vmem:[%s320 + $0x8] sm:$0xff]
        %v365 = vsub.f32 %v361, %v363
        %v366 = vsub.f32 %v362, %v364
        %v367 = vld [vmem:[#allocation2] sm:$0xff]
        %v368 = vmul.f32 %v365, %v365
        %v369 = vmul.f32 %v366, %v366
        %v370 = vadd.f32 %v368, %v369
        %v371 = vadd.f32 %v367, %v370
        %372 = vst [vmem:[#allocation2] sm:$0xff] %v371
        %v373 = vld [vmem:[%s331] sm:$0xff]
        %v374 = vld [vmem:[%s341] sm:$0xff]
        %v375 = vlog2.pop %v373
        %v376 = vmul.f32 %v375, 0.6931472
        %v377 = vmax.f32 %v376, -100.0
        %v378 = vsub.f32 1.0, %v373
        %v379 = vlog2.pop %v378
        %v380 = vmul.f32 %v379, 0.6931472
        %v381 = vmax.f32 %v380, -100.0
        %v382 = vmul.f32 %v374, %v377
        %v383 = vsub.f32 1.0, %v374
        %v384 = vmul.f32 %v383, %v381
        %v385 = vadd.f32 %v382, %v384
        %v386 = vsub.f32 0.0, %v385
        %v387 = vld [vmem:[#allocation3] sm:$0xff]
        %v388 = vadd.f32 %v386, 0.0
        %v389 = vadd.f32 %v387, %v388
        %390 = vst [vmem:[#allocation3] sm:$0xff] %v389
      $region44: #{bce_l2_loss2g.1} parent=35 // pred_fallthru
        _
      // Predicated region
      $region45: #{bce_l2_loss2g.1} parent=35 // pred_check
        %p391 = pneg %p348
      $region46: #{bce_l2_loss2g.1} parent=35 // pred_check_branch
        %393 = sbr.rel (%p391) target = $region48
      $region47: #{bce_l2_loss2g.1} parent=35 // pred_region
        %v394 = vld [vmem:[#allocation2] sm:$0xff]
        %395 = vadd.xlane.f32.xlu0 %v394
        %v396 = vpop.xlane.xlu0 %395
        %v397 = vrot.slane %v396, 4
        %v398 = vadd.f32 %v396, %v397
        %v399 = vrot.slane %v398, 2
        %v400 = vadd.f32 %v398, %v399
        %v401 = vrot.slane %v400, 1
        %v402 = vadd.f32 %v400, %v401
        %s403 = vtos %v402
        %v404 = vstv %s403
        %v405 = vld [vmem:[#allocation3] sm:$0xff]
        %406 = vadd.xlane.f32.xlu0 %v405
        %v407 = vpop.xlane.xlu0 %406
        %v408 = vrot.slane %v407, 4
        %v409 = vadd.f32 %v407, %v408
        %v410 = vrot.slane %v409, 2
        %v411 = vadd.f32 %v409, %v410
        %v412 = vrot.slane %v411, 1
        %v413 = vadd.f32 %v411, %v412
        %s414 = vtos %v413
        %v415 = vstv %s414
        %v416 = vmul.f32 %v404, 0.00048828125
        %v417 = vmul.f32 %v415, 0.001953125
        %v418 = vmul.f32 %v417, 0.5
        %v419 = vadd.f32 %v416, %v418
        %vm420 = vcmask 0
        %421 = vst.msk [vmem:[%s347] sm:$0x1] %vm420, %v419
      $region48: #{bce_l2_loss2g.1} parent=35 // pred_fallthru
        _
      %p422 = scmp.lt.s32.totalorder %s19, 1
      %s423 = scalar_select %p422, %s19, 1
      %s424 = scalar_lea.vmem %s4, %s423
      // Predicated region
      $region49: #{bce_l2_loss2g.1} parent=35 // pred_check
        %p425 = pneg %p173
      $region50: #{bce_l2_loss2g.1} parent=35 // pred_check_branch
        %427 = sbr.rel (%p425) target = $region52
      $region51: #{bce_l2_loss2g.1} parent=35 // pred_region
        _
      $region52: #{bce_l2_loss2g.1} parent=35 // pred_fallthru
        _
    $region36: #{bce_l2_loss2g.1} parent=5 // pred_fallthru
      _
    %p428 = scmp.le.s32.totalorder 2, %s10
    // Predicated region
    $region53: #{bce_l2_loss2g.1} parent=5 // pred_check
      %p429 = pneg %p428
    $region54: #{bce_l2_loss2g.1} parent=5 // pred_check_branch
      %431 = sbr.rel (%p429) target = $region56
    $region55: #{bce_l2_loss2g.1} parent=5 // pred_region
      %s432 = ssub.s32 %s10, 2
      // Predicated region
      $region57: #{bce_l2_loss2g.1} parent=55 // pred_check
        %p433 = pneg %p179
      $region58: #{bce_l2_loss2g.1} parent=55 // pred_check_branch
        %435 = sbr.rel (%p433) target = $region60
      $region59: #{bce_l2_loss2g.1} parent=55 // pred_region
        %p436 = scmp.lt.s32.totalorder %s21, 1
        %s437 = scalar_select %p436, %s21, 1
        %s438 = scalar_lea.vmem %s4, %s437
      $region60: #{bce_l2_loss2g.1} parent=55 // pred_fallthru
        _
    $region56: #{bce_l2_loss2g.1} parent=5 // pred_fallthru
      _
  $region6: #{bce_l2_loss2g.1} parent=0 // loop_footer
    %s14 = sadd.s32 1, %s10
  $region7: #{bce_l2_loss2g.1} parent=0 // loop_footer_branch
    %9 = sbr.rel target = $region3
  $region8: #{bce_l2_loss2g.1} parent=0 // loop_exit
    _

</llo_original>
